<compile_context>
chip_gen: v5e
topology: v5e:2x2
jax: 0.10.0
libtpu: 0.0.40
codegen_flags: <defaults>
</compile_context>

<pallas_src>
import functools

import jax
import jax.numpy as jnp
from jax import lax
from jax.experimental import pallas as pl
from jax.experimental.pallas import tpu as pltpu

_MASK_VALUE = -1e30     # finite "-inf" for causal masking (keeps all arithmetic finite)
_LANE = 128


def _pad_lane(n):
    return -(-int(n) // _LANE) * _LANE


def _pick_tile(dim, target):
    """Largest tile <= target that evenly divides `dim` (multiple of 8), else full dim."""
    if dim <= target:
        return dim
    t = (min(target, dim) // 8) * 8
    while t >= 8:
        if dim % t == 0:
            return t
        t -= 8
    return dim


def _vmem_cap_bytes():
    """Physical per-core VMEM minus ~12 MiB headroom (v7x: 64 MiB, v5e/v6e: 128 MiB)."""
    phys = 128 * 1024 * 1024
    try:
        kind = jax.devices()[0].device_kind.lower()
        if "v7" in kind:
            phys = 64 * 1024 * 1024
    except Exception:
        pass
    try:
        reported = int(getattr(pltpu.get_tpu_info(), "vmem_capacity_bytes", 0))
        if reported > 0:
            phys = min(phys, reported)
    except Exception:
        pass
    return max(phys - 12 * 1024 * 1024, 24 * 1024 * 1024)


def _default_exp_dtype(mxu_dtype):
    """bf16 exp (EUP) only where the hardware has a bf16 EUP (v6e / v7x)."""
    if jnp.dtype(mxu_dtype) != jnp.dtype(jnp.bfloat16):
        return jnp.float32
    try:
        kind = jax.devices()[0].device_kind.lower()
    except Exception:
        return jnp.float32
    if "v6" in kind or "v7" in kind:
        return jnp.bfloat16
    return jnp.float32


# ---------------------------------------------------------------------------
# Packed K/V projection kernels: one (R, 2H) lane-dense output stream.
# ---------------------------------------------------------------------------
def _kv_project_shared_kernel(x_ref, wkv_ref, bkv_ref, out_ref, *, mxu_dtype):
    # keys is values -> single matmul against the concatenated (E, 2H) weight.
    x = x_ref[...].astype(mxu_dtype)
    w = wkv_ref[...].astype(mxu_dtype)
    out = jnp.dot(x, w, preferred_element_type=jnp.float32) + bkv_ref[...]
    out_ref[...] = out.astype(out_ref.dtype)


def _kv_project_kernel(k_ref, v_ref, wk_ref, wv_ref, bkv_ref, out_ref, *, mxu_dtype):
    k = k_ref[...].astype(mxu_dtype)
    v = v_ref[...].astype(mxu_dtype)
    kp = jnp.dot(k, wk_ref[...].astype(mxu_dtype), preferred_element_type=jnp.float32)
    vp = jnp.dot(v, wv_ref[...].astype(mxu_dtype), preferred_element_type=jnp.float32)
    out = jnp.concatenate([kp, vp], axis=-1) + bkv_ref[...]
    out_ref[...] = out.astype(out_ref.dtype)


def _project_kv(keys2d, values2d, wk, wv, bkv2, out_dtype, mxu_dtype, *, tile_rows=512):
    """Project K and V once, packed as (R, 2H). If values2d is keys2d the weights
    are concatenated into a single (E, 2H) matmul."""
    R, E = keys2d.shape
    H2 = bkv2.shape[1]
    shared = values2d is keys2d

    in_sz = jnp.dtype(keys2d.dtype).itemsize
    out_sz = jnp.dtype(out_dtype).itemsize
    cap = _vmem_cap_bytes()

    def _est(tr):
        n_in = 1 if shared else 2
        return int(2 * n_in * tr * E * in_sz            # double-buffered input rows
                   + 2 * tr * _pad_lane(H2) * out_sz    # double-buffered output
                   + E * _pad_lane(H2) * 4              # weights
                   + 4 * tr * _pad_lane(H2) * 4)        # f32 intermediates

    tr = _pick_tile(R, tile_rows)
    for _ in range(4):   # shrink rows for very large E (v5e's small scoped VMEM)
        if 2 * _est(tr) <= cap or tr <= 64:
            break
        new_tr = _pick_tile(R, max(64, tr // 2))
        if new_tr >= tr:
            break
        tr = new_tr
    vmem_limit = min(cap, max(32 * 1024 * 1024, 2 * _est(tr)))
    cparams = pltpu.CompilerParams(dimension_semantics=("parallel",),
                                   vmem_limit_bytes=vmem_limit)

    if shared:
        wkv = jnp.concatenate([wk, wv], axis=1)          # (E, 2H): single MXU pass
        kernel = functools.partial(_kv_project_shared_kernel, mxu_dtype=mxu_dtype)
        return pl.pallas_call(
            kernel,
            out_shape=jax.ShapeDtypeStruct((R, H2), out_dtype),
            grid=(pl.cdiv(R, tr),),
            in_specs=[pl.BlockSpec((tr, E), lambda r: (r, 0)),
                      pl.BlockSpec((E, H2), lambda r: (0, 0)),
                      pl.BlockSpec((1, H2), lambda r: (0, 0))],
            out_specs=pl.BlockSpec((tr, H2), lambda r: (r, 0)),
            compiler_params=cparams,
        )(keys2d, wkv, bkv2)

    H = H2 // 2
    kernel = functools.partial(_kv_project_kernel, mxu_dtype=mxu_dtype)
    return pl.pallas_call(
        kernel,
        out_shape=jax.ShapeDtypeStruct((R, H2), out_dtype),
        grid=(pl.cdiv(R, tr),),
        in_specs=[pl.BlockSpec((tr, E), lambda r: (r, 0)),
                  pl.BlockSpec((tr, E), lambda r: (r, 0)),
                  pl.BlockSpec((E, H), lambda r: (0, 0)),
                  pl.BlockSpec((E, H), lambda r: (0, 0)),
                  pl.BlockSpec((1, H2), lambda r: (0, 0))],
        out_specs=pl.BlockSpec((tr, H2), lambda r: (r, 0)),
        compiler_params=cparams,
    )(keys2d, values2d, wk, wv, bkv2)


# ---------------------------------------------------------------------------
# Flash attention kernel with fused Q projection, consuming packed [K | V].
# ---------------------------------------------------------------------------
def _flash_attn_head_kernel(q_ref, kv_ref, wq_ref, bq_ref, o_ref,
                            qp_ref, m_ref, l_ref, acc_ref, *,
                            is_causal, head_dim, tile_q, tile_k, scale,
                            mxu_dtype, exp_dtype):
    qi = pl.program_id(1)
    kt = pl.program_id(2)
    num_kt = pl.num_programs(2)

    @pl.when(kt == 0)
    def _init():
        # Project this Q tile once (reused across all kv tiles); fold in 1/sqrt(H).
        q = q_ref[0].astype(mxu_dtype)
        w = wq_ref[...].astype(mxu_dtype)
        qp = jnp.dot(q, w, preferred_element_type=jnp.float32) + bq_ref[...]
        qp_ref[...] = qp * scale
        m_ref[...] = jnp.full_like(m_ref, -jnp.inf)
        l_ref[...] = jnp.zeros_like(l_ref)
        acc_ref[...] = jnp.zeros_like(acc_ref)

    q_start = qi * tile_q
    k_start = kt * tile_k
    exp_f32 = jnp.dtype(exp_dtype) == jnp.dtype(jnp.float32)

    def _accumulate(apply_mask):
        kv = kv_ref[0]                          # (tile_k, 2H) packed [K | V]
        k = kv[:, :head_dim]
        v = kv[:, head_dim:]
        # QK^T without materializing a transpose: contract last dims of both.
        s = lax.dot_general(qp_ref[...].astype(k.dtype), k,
                            (((1,), (1,)), ((), ())),
                            preferred_element_type=jnp.float32)   # (tile_q, tile_k)
        if apply_mask:
            row = q_start + lax.broadcasted_iota(jnp.int32, s.shape, 0)
            col = k_start + lax.broadcasted_iota(jnp.int32, s.shape, 1)
            s = jnp.where(col <= row, s, _MASK_VALUE)
        m_prev = m_ref[...]
        m_new = jnp.maximum(m_prev, jnp.max(s, axis=-1, keepdims=True))
        alpha = jnp.exp(m_prev - m_new)
        if exp_f32:
            p = jnp.exp(s - m_new)
            p_sum = jnp.sum(p, axis=-1, keepdims=True)
        else:
            # bf16 EUP exp (v6e/v7x); m, l, alpha and the l accumulation stay f32.
            p = jnp.exp((s - m_new).astype(exp_dtype))
            p_sum = jnp.sum(p.astype(jnp.float32), axis=-1, keepdims=True)
        l_ref[...] = alpha * l_ref[...] + p_sum
        acc_ref[...] = alpha * acc_ref[...] + jnp.dot(
            p.astype(v.dtype), v, preferred_element_type=jnp.float32)
        m_ref[...] = m_new

    if is_causal:
        # Tiles fully below the diagonal need no mask; straddling tiles do; tiles
        # fully above the diagonal are skipped (their K/V DMA is elided by the
        # clamped index_map in the wrapper).
        below = k_start + tile_k - 1 <= q_start
        straddle = jnp.logical_and(k_start + tile_k - 1 > q_start,
                                   k_start <= q_start + tile_q - 1)
        pl.when(below)(lambda: _accumulate(False))
        pl.when(straddle)(lambda: _accumulate(True))
    else:
        _accumulate(False)

    @pl.when(kt == num_kt - 1)
    def _finalize():
        # Single reciprocal on the (tile_q, 1) denominator applied to the
        # (tile_q, H) accumulator — O(Sq*H) normalization, off the (Sq,Sk) path.
        inv_l = pl.reciprocal(l_ref[...], approx=False)
        o_ref[0] = (acc_ref[...] * inv_l).astype(o_ref.dtype)


def attention_head(queries, keys, values, wq, wk, wv, bq, bk, bv, *,
                   is_causal=False, mxu_dtype=jnp.bfloat16, exp_dtype=None,
                   tile_q=512, tile_k=512):
    """queries/keys/values: (B, S, E); wq/wk/wv: (E, H) (= torch weight.T); b*: (H,).

    mxu_dtype: dtype of MXU operands and of the projected K/V cache. Default bf16
    (2x MXU rate on v6e/v7x, half the K/V HBM/VMEM traffic); pass jnp.float32 for
    a full-precision path. Softmax state and accumulation always stay f32.
    """
    B, Sq, E = queries.shape
    _, Sk, _ = keys.shape
    H = wq.shape[1]
    out_dtype = queries.dtype
    proj_dtype = mxu_dtype
    if exp_dtype is None:
        exp_dtype = _default_exp_dtype(mxu_dtype)

    bq2 = bq.reshape(1, H).astype(jnp.float32)
    bkv2 = jnp.concatenate([bk, bv]).reshape(1, 2 * H).astype(jnp.float32)

    # K/V projections computed exactly once, packed as (B, Sk, 2H): lane-dense
    # stores, a single input stream for attention, one fused matmul if keys is values.
    keys2d = keys.reshape(B * Sk, E)
    values2d = keys2d if values is keys else values.reshape(B * Sk, E)
    kv2d = _project_kv(keys2d, values2d, wk, wv, bkv2, proj_dtype, mxu_dtype)
    kvp = kv2d.reshape(B, Sk, 2 * H)

    tq = _pick_tile(Sq, tile_q)
    tk = _pick_tile(Sk, tile_k)
    # v7x has two TensorCores: ensure a 'parallel' axis has >= 2 blocks when B == 1.
    if B == 1 and Sq // tq < 2:
        tq2 = _pick_tile(Sq, max(8, tq // 2))
        if Sq // tq2 >= 2:
            tq = tq2

    q_sz = jnp.dtype(queries.dtype).itemsize
    kv_sz = jnp.dtype(proj_dtype).itemsize
    cap = _vmem_cap_bytes()

    def _vmem_est(tq_, tk_):
        return int(
            2 * tq_ * E * q_sz                        # q block (double-buffer bound)
            + 2 * tk_ * _pad_lane(2 * H) * kv_sz      # packed K/V block (double-buffered)
            + 2 * tq_ * _pad_lane(H) * q_sz           # out block
            + 2 * (E + 1) * _pad_lane(H) * 4          # W_q, b_q
            + 2 * tq_ * _pad_lane(H) * 4              # qp + acc scratch
            + 2 * tq_ * _LANE * 4                     # m + l scratch (lane padded)
            + 5 * tq_ * tk_ * 4)                      # live (tq, tk) f32/i32 temporaries

    for _ in range(4):   # shrink tiles if they would not fit this chip's VMEM
        if 2 * _vmem_est(tq, tk) <= cap or max(tq, tk) <= 128:
            break
        if tk >= tq:
            new = _pick_tile(Sk, max(128, tk // 2))
            if new >= tk:
                break
            tk = new
        else:
            new = _pick_tile(Sq, max(128, tq // 2))
            if new >= tq:
                break
            tq = new

    vmem_limit = min(cap, max(32 * 1024 * 1024, 2 * _vmem_est(tq, tk)))
    grid = (B, Sq // tq, Sk // tk)
    scale = 1.0 / (float(H) ** 0.5)

    if is_causal:
        # Clamp the kv block index for fully-masked tiles: repeated block index
        # => the pipeliner elides the (skipped) K/V DMA, ~halving causal KV traffic.
        kv_index_map = lambda b, qi, kt: (b, jnp.minimum(kt, (qi * tq + tq - 1) // tk), 0)
    else:
        kv_index_map = lambda b, qi, kt: (b, kt, 0)

    def _build(single_buffer_invariants, exp_dt):
        # Inputs whose block index never changes along the innermost kt axis do
        # not need double-buffering; Buffered(1) halves their VMEM footprint.
        inv = ({"pipeline_mode": pl.Buffered(1)} if single_buffer_invariants else {})
        kernel = functools.partial(
            _flash_attn_head_kernel, is_causal=is_causal, head_dim=H,
            tile_q=tq, tile_k=tk, scale=scale, mxu_dtype=mxu_dtype, exp_dtype=exp_dt)
        return pl.pallas_call(
            kernel,
            out_shape=jax.ShapeDtypeStruct((B, Sq, H), out_dtype),
            grid=grid,
            in_specs=[
                pl.BlockSpec((1, tq, E), lambda b, qi, kt: (b, qi, 0), **inv),   # raw Q
                pl.BlockSpec((1, tk, 2 * H), kv_index_map),                      # packed KV
                pl.BlockSpec((E, H), lambda b, qi, kt: (0, 0), **inv),           # W_q
                pl.BlockSpec((1, H), lambda b, qi, kt: (0, 0), **inv),           # b_q
            ],
            out_specs=pl.BlockSpec((1, tq, H), lambda b, qi, kt: (b, qi, 0)),
            scratch_shapes=[
                pltpu.VMEM((tq, H), jnp.float32),   # scaled projected Q tile
                pltpu.VMEM((tq, 1), jnp.float32),   # running max m
                pltpu.VMEM((tq, 1), jnp.float32),   # running denom l
                pltpu.VMEM((tq, H), jnp.float32),   # output accumulator
            ],
            compiler_params=pltpu.CompilerParams(
                dimension_semantics=("parallel", "parallel", "arbitrary"),
                vmem_limit_bytes=vmem_limit),
        )

    # Preferred configuration first; fall back if a feature (Buffered(1) single
    # buffering / bf16 EUP exp) is unavailable on this jax version or chip.
    attempts = [(True, exp_dtype), (False, exp_dtype)]
    if jnp.dtype(exp_dtype) != jnp.dtype(jnp.float32):
        attempts.append((False, jnp.float32))
    last_err = None
    for single_buf, exp_dt in attempts:
        try:
            return _build(single_buf, exp_dt)(queries, kvp, wq, bq2)
        except Exception as err:          # pragma: no cover - feature fallback
            last_err = err
    raise last_err


# ---------------------------------------------------------------------------
# Pure-JAX reference.
# ---------------------------------------------------------------------------
def _reference(queries, keys, values, wq, wk, wv, bq, bk, bv, *, is_causal=False):
    Q = queries @ wq + bq
    K = keys @ wk + bk
    V = values @ wv + bv
    H = Q.shape[-1]
    scores = jnp.einsum("bqd,bkd->bqk", Q, K) / jnp.sqrt(jnp.float32(H))
    if is_causal:
        sq, sk = scores.shape[-2:]
        mask = jnp.tril(jnp.ones((sq, sk), dtype=bool))
        scores = jnp.where(mask, scores, -jnp.inf)
    attn = jax.nn.softmax(scores, axis=-1)
    return jnp.einsum("bqk,bkd->bqd", attn, V)


if __name__ == "__main__":
    def make_inputs(key, B, S, E, H):
        kq, kk, kv, kwq, kwk, kwv, kbq, kbk, kbv = jax.random.split(key, 9)
        q = jax.random.normal(kq, (B, S, E), dtype=jnp.float32)
        k = jax.random.normal(kk, (B, S, E), dtype=jnp.float32)
        v = jax.random.normal(kv, (B, S, E), dtype=jnp.float32)
        bound = 1.0 / (E ** 0.5)
        u = lambda kk_, shape: jax.random.uniform(
            kk_, shape, minval=-bound, maxval=bound, dtype=jnp.float32)
        return (q, k, v, u(kwq, (E, H)), u(kwk, (E, H)), u(kwv, (E, H)),
                u(kbq, (H,)), u(kbk, (H,)), u(kbv, (H,)))

    # Case 1: tiny shapes matching the module example (single tile).
    args_small = make_inputs(jax.random.PRNGKey(0), 2, 8, 32, 16)
    # Case 2: multi-tile flash path (2x2 kv tiles): online softmax, causal DMA
    # clamp, below-diagonal (unmasked) vs straddling (masked) tile branches.
    args_med = make_inputs(jax.random.PRNGKey(1), 2, 128, 64, 32)

    # Full-precision (f32 MXU operand) path: tight tolerance.
    for args, (tq, tk) in ((args_small, (512, 512)), (args_med, (64, 64))):
        for is_causal in (False, True):
            out = attention_head(*args, is_causal=is_causal, mxu_dtype=jnp.float32,
                                 tile_q=tq, tile_k=tk)
            out = jax.block_until_ready(out)
            ref = _reference(*args, is_causal=is_causal)
            assert out.shape == ref.shape
            assert jnp.allclose(out, ref, atol=1e-4, rtol=1e-4), (
                f"f32 mismatch is_causal={is_causal} shape={args[0].shape}")

    # Default path: bf16 MXU operands + bf16 K/V cache (+ bf16 exp on v6e/v7x).
    for is_causal in (False, True):
        out = attention_head(*args_med, is_causal=is_causal, tile_q=64, tile_k=64)
        out = jax.block_until_ready(out)
        ref = _reference(*args_med, is_causal=is_causal)
        assert jnp.allclose(out, ref, atol=5e-2, rtol=5e-2), (
            f"bf16 mismatch is_causal={is_causal}")

    # Self-attention style call (keys is values): fused (E, 2H) projection matmul.
    q_s, k_s, _, wq_s, wk_s, wv_s, bq_s, bk_s, bv_s = args_small
    out = attention_head(q_s, k_s, k_s, wq_s, wk_s, wv_s, bq_s, bk_s, bv_s,
                         is_causal=True, mxu_dtype=jnp.float32)
    out = jax.block_until_ready(out)
    ref = _reference(q_s, k_s, k_s, wq_s, wk_s, wv_s, bq_s, bk_s, bv_s,
                     is_causal=True)
    assert jnp.allclose(out, ref, atol=1e-4, rtol=1e-4), "shared-KV path mismatch"

    # TODO(synk): for lane-dense output stores and full MXU width, fuse all heads
    # of the surrounding layer so the output/projection last dim is
    # num_heads*head_dim (a multiple of 128); a single AttentionHead with
    # head_dim=16/32 necessarily stores partial lanes.
    print("KERNEL_OK")
</pallas_src>

<mosaic_0001>
module attributes {stable_mosaic.version = 11 : i64} {
  func.func @_kv_project_kernel(%arg0: i32, %arg1: memref<16x32xf32, #tpu.memory_space<vmem>>, %arg2: memref<16x32xf32, #tpu.memory_space<vmem>>, %arg3: memref<32x16xf32, #tpu.memory_space<vmem>>, %arg4: memref<32x16xf32, #tpu.memory_space<vmem>>, %arg5: memref<1x32xf32, #tpu.memory_space<vmem>>, %arg6: memref<16x32xf32, #tpu.memory_space<vmem>>) attributes {dimension_semantics = [#tpu.dimension_semantics<parallel>], iteration_bounds = array<i64: 1>, scalar_prefetch = 0 : i64, scratch_operands = 0 : i64, tpu.core_type = #tpu.core_type<tc>, window_params = [{transform_indices = @transform_0, window_bounds = array<i64: 16, 32>}, {transform_indices = @transform_1, window_bounds = array<i64: 16, 32>}, {pipeline_mode = #tpu.pipeline_mode<synchronous>, transform_indices = @transform_2, window_bounds = array<i64: 32, 16>}, {pipeline_mode = #tpu.pipeline_mode<synchronous>, transform_indices = @transform_3, window_bounds = array<i64: 32, 16>}, {pipeline_mode = #tpu.pipeline_mode<synchronous>, transform_indices = @transform_4, window_bounds = array<i64: 1, 32>}, {transform_indices = @transform_5, window_bounds = array<i64: 16, 32>}]} {
    %c0 = arith.constant 0 : index
    %c0_0 = arith.constant 0 : index
    %0 = vector.load %arg1[%c0, %c0_0] : memref<16x32xf32, #tpu.memory_space<vmem>>, vector<16x32xf32>
    %c0_1 = arith.constant 0 : index
    %c0_2 = arith.constant 0 : index
    %1 = vector.load %arg2[%c0_1, %c0_2] : memref<16x32xf32, #tpu.memory_space<vmem>>, vector<16x32xf32>
    %c0_3 = arith.constant 0 : index
    %c0_4 = arith.constant 0 : index
    %2 = vector.load %arg3[%c0_3, %c0_4] : memref<32x16xf32, #tpu.memory_space<vmem>>, vector<32x16xf32>
    %cst = arith.constant dense<0.000000e+00> : vector<16x16xf32>
    %3 = tpu.matmul %0, %2, %cst {dimension_numbers = #tpu.dot_dimension_numbers<[1], [0], [0], [1], [0, 0, 1, 1], [], []>} : vector<16x32xf32>, vector<32x16xf32>, vector<16x16xf32> -> vector<16x16xf32>
    %c0_5 = arith.constant 0 : index
    %c0_6 = arith.constant 0 : index
    %4 = vector.load %arg4[%c0_5, %c0_6] : memref<32x16xf32, #tpu.memory_space<vmem>>, vector<32x16xf32>
    %cst_7 = arith.constant dense<0.000000e+00> : vector<16x16xf32>
    %5 = tpu.matmul %1, %4, %cst_7 {dimension_numbers = #tpu.dot_dimension_numbers<[1], [0], [0], [1], [0, 0, 1, 1], [], []>} : vector<16x32xf32>, vector<32x16xf32>, vector<16x16xf32> -> vector<16x16xf32>
    %6 = tpu.concatenate %3, %5 in 1 : vector<16x16xf32>, vector<16x16xf32> -> vector<16x32xf32>
    %c0_8 = arith.constant 0 : index
    %c0_9 = arith.constant 0 : index
    %7 = vector.load %arg5[%c0_8, %c0_9] : memref<1x32xf32, #tpu.memory_space<vmem>>, vector<1x32xf32>
    %8 = vector.broadcast %7 : vector<1x32xf32> to vector<16x32xf32>
    %9 = arith.addf %6, %8 : vector<16x32xf32>
    %c0_10 = arith.constant 0 : index
    %c0_11 = arith.constant 0 : index
    %10 = vector.load %arg6[%c0_10, %c0_11] : memref<16x32xf32, #tpu.memory_space<vmem>>, vector<16x32xf32>
    tpu.vector_store %arg6[%c0_10, %c0_11], %9 {strides = array<i32>} : memref<16x32xf32, #tpu.memory_space<vmem>>, vector<16x32xf32>,
    return
  }
  func.func @transform_0(%arg0: i32) -> (i32, i32) {
    %c0_i32 = arith.constant 0 : i32
    %c0_i32_0 = arith.constant 0 : i32
    return %arg0, %c0_i32 : i32, i32
  }
  func.func @transform_1(%arg0: i32) -> (i32, i32) {
    %c0_i32 = arith.constant 0 : i32
    %c0_i32_0 = arith.constant 0 : i32
    return %arg0, %c0_i32 : i32, i32
  }
  func.func @transform_2(%arg0: i32) -> (i32, i32) {
    %c0_i32 = arith.constant 0 : i32
    %c0_i32_0 = arith.constant 0 : i32
    %c0_i32_1 = arith.constant 0 : i32
    return %c0_i32, %c0_i32_0 : i32, i32
  }
  func.func @transform_3(%arg0: i32) -> (i32, i32) {
    %c0_i32 = arith.constant 0 : i32
    %c0_i32_0 = arith.constant 0 : i32
    %c0_i32_1 = arith.constant 0 : i32
    return %c0_i32, %c0_i32_0 : i32, i32
  }
  func.func @transform_4(%arg0: i32) -> (i32, i32) {
    %c0_i32 = arith.constant 0 : i32
    %c0_i32_0 = arith.constant 0 : i32
    %c0_i32_1 = arith.constant 0 : i32
    return %c0_i32, %c0_i32_0 : i32, i32
  }
  func.func @transform_5(%arg0: i32) -> (i32, i32) {
    %c0_i32 = arith.constant 0 : i32
    %c0_i32_0 = arith.constant 0 : i32
    return %arg0, %c0_i32 : i32, i32
  }
}

</mosaic_0001>

<llo_original>
// kernel: tpu_custom_call.1
$region0: #{tpu_custom_call.1}
  #allocation0 [shape = 'u32[]', space=smem, size = 0x4, offset = 0x4, fixed_abs, tag = 'smem constant byte address 0x4 - core index']
  #allocation1 [shape = 'u32[72,128]{1,0:T(1,128)}', space=vmem, size = 0x9000, scoped, tag = 'internal scratch']
  %s0 = inlined_call_operand.vmem [shape: f32[16,32], index: 0, kind: input, shape index: {}]
  %s1 = inlined_call_operand.vmem [shape: f32[16,32], index: 1, kind: input, shape index: {}]
  %s2 = inlined_call_operand.vmem [shape: f32[32,16], index: 2, kind: input, shape index: {}]
  %s3 = inlined_call_operand.vmem [shape: f32[32,16], index: 3, kind: input, shape index: {}]
  %s4 = inlined_call_operand.vmem [shape: f32[1,32], index: 4, kind: input, shape index: {}]
  %s5 = inlined_call_operand.hbm [shape: f32[16,32], index: 5, kind: output, shape index: {}]
  %s6 = sld [smem:[#allocation0]]
  $region30: #{tpu_custom_call.1} parent=0
    _
  %s8 = ssub.s32 1, %s6
  %s9 = scalar_select 0, %s8, %s6
  $region1: #{tpu_custom_call.1} parent=0
    #allocation2 [shape = 'u8[8192]{0}', space=vmem, size = 0x2000, scoped, tag = 'output window, operand 0, single buffered']
    #allocation3 [shape = 's32[1]{0}', space=sflag, size = 0x4, scoped, tag = 'scoped memory for tpu_custom_call.1']
    %10 = vsyncpa [#allocation3], 0
    // Predicated region
    $region2: #{tpu_custom_call.1} parent=1 // pred_check
      _
    $region3: #{tpu_custom_call.1} parent=1 // pred_check_branch
      %12 = sbr.rel (0) target = $region5
    $region4: #{tpu_custom_call.1} parent=1 // pred_region
      _
    $region5: #{tpu_custom_call.1} parent=1 // pred_fallthru
      _
    // Predicated region
    $region6: #{tpu_custom_call.1} parent=1 // pred_check
      _
    $region7: #{tpu_custom_call.1} parent=1 // pred_check_branch
      %14 = sbr.rel (0) target = $region9
    $region8: #{tpu_custom_call.1} parent=1 // pred_region
      _
    $region9: #{tpu_custom_call.1} parent=1 // pred_fallthru
      _
    // Predicated region
    $region10: #{tpu_custom_call.1} parent=1 // pred_check
      _
    $region11: #{tpu_custom_call.1} parent=1 // pred_check_branch
      %16 = sbr.rel (0) target = $region13
    $region12: #{tpu_custom_call.1} parent=1 // pred_region
      _
    $region13: #{tpu_custom_call.1} parent=1 // pred_fallthru
      _
    // Predicated region
    $region14: #{tpu_custom_call.1} parent=1 // pred_check
      _
    $region15: #{tpu_custom_call.1} parent=1 // pred_check_branch
      %18 = sbr.rel (0) target = $region17
    $region16: #{tpu_custom_call.1} parent=1 // pred_region
      _
    $region17: #{tpu_custom_call.1} parent=1 // pred_fallthru
      _
    // Predicated region
    $region18: #{tpu_custom_call.1} parent=1 // pred_check
      _
    $region19: #{tpu_custom_call.1} parent=1 // pred_check_branch
      %20 = sbr.rel (0) target = $region21
    $region20: #{tpu_custom_call.1} parent=1 // pred_region
      _
    $region21: #{tpu_custom_call.1} parent=1 // pred_fallthru
      _
    %v21 = vld [vmem:[%s0] sm:$0xff]
    %v22 = vld [vmem:[%s0 + $0x8] sm:$0xff]
    %v23 = vld [vmem:[%s1] sm:$0xff]
    %v24 = vld [vmem:[%s1 + $0x8] sm:$0xff]
    %v25 = vld [vmem:[%s2] sm:$0xff]
    %v26 = vld [vmem:[%s2 + $0x8] sm:$0xff]
    %v27 = vld [vmem:[%s2 + $0x10] sm:$0xff]
    %v28 = vld [vmem:[%s2 + $0x18] sm:$0xff]
    %vm29 = vcmask 261120
    %v31 = vsel %vm29, %v21, 0
    %v34 = vsel %vm29, %v22, 0
    %36 = vmatpush.msra.mxu0 0.0
    %37 = vmatpush.msra.mxu0 0.0
    %38 = vmatpush.msra.mxu0 0.0
    %39 = vmatpush.msra.mxu0 0.0
    %40 = vmatpush.msra.mxu0 0.0
    %41 = vmatpush.msra.mxu0 0.0
    %42 = vmatpush.msra.mxu0 0.0
    %43 = vmatpush.msra.mxu0 0.0
    %44 = vmatpush.msra.mxu0 0.0
    %45 = vmatpush.msra.mxu0 0.0
    %46 = vmatpush.msra.mxu0 0.0
    %47 = vmatpush.msra.mxu0 0.0
    %48 = vmatpush.msra.mxu0 %v28
    %49 = vmatpush.msra.mxu0 %v27
    %50 = vmatpush.msra.mxu0 %v26
    %51 = vmatpush.msra.mxu0 %v25
    %52 = vmatmul.f32.gmra.mxu0 %v31
    %v53 = vpop.f32.mrf.mxu0
    %v54 = vadd.f32 0.0, %v53
    %55 = vmatmul.f32.gmra.mxu0 %v34
    %v56 = vpop.f32.mrf.mxu0
    %v57 = vadd.f32 0.0, %v56
    %58 = vdwg.mxu0
    %v59 = vld [vmem:[%s3] sm:$0xff]
    %v60 = vld [vmem:[%s3 + $0x8] sm:$0xff]
    %v61 = vld [vmem:[%s3 + $0x10] sm:$0xff]
    %v62 = vld [vmem:[%s3 + $0x18] sm:$0xff]
    %v64 = vsel %vm29, %v23, 0
    %v67 = vsel %vm29, %v24, 0
    %69 = vmatpush.msra.mxu0 0.0
    %70 = vmatpush.msra.mxu0 0.0
    %71 = vmatpush.msra.mxu0 0.0
    %72 = vmatpush.msra.mxu0 0.0
    %73 = vmatpush.msra.mxu0 0.0
    %74 = vmatpush.msra.mxu0 0.0
    %75 = vmatpush.msra.mxu0 0.0
    %76 = vmatpush.msra.mxu0 0.0
    %77 = vmatpush.msra.mxu0 0.0
    %78 = vmatpush.msra.mxu0 0.0
    %79 = vmatpush.msra.mxu0 0.0
    %80 = vmatpush.msra.mxu0 0.0
    %81 = vmatpush.msra.mxu0 %v62
    %82 = vmatpush.msra.mxu0 %v61
    %83 = vmatpush.msra.mxu0 %v60
    %84 = vmatpush.msra.mxu0 %v59
    %85 = vmatmul.f32.gmra.mxu0 %v64
    %v86 = vpop.f32.mrf.mxu0
    %v87 = vadd.f32 0.0, %v86
    %88 = vmatmul.f32.gmra.mxu0 %v67
    %v89 = vpop.f32.mrf.mxu0
    %v90 = vadd.f32 0.0, %v89
    %91 = vdwg.mxu0
    %94 = vrot.lane.b32.xlu0 %v87, 16
    %v95 = vpop.permute.xlu0 %94
    %96 = vrot.lane.b32.xlu0 %v90, 16
    %v97 = vpop.permute.xlu0 %96
    %vm100 = vcmask 130048
    %v101 = vsel %vm100, %v54, %v95
    %v102 = vsel %vm100, %v57, %v97
    %v103 = vld [vmem:[%s4] sm:$0x1]
    %v105 = vperm.slane %v103, 0
    %v107 = vadd.f32 %v101, %v105
    %v108 = vadd.f32 %v102, %v105
    %109 = vst.msk [vmem:[#allocation2] sm:$0xff] %vm29, %v107
    %110 = vst.msk [vmem:[#allocation2 + $0x8] sm:$0xff] %vm29, %v108
    // Predicated region
    $region22: #{tpu_custom_call.1} parent=1 // pred_check
      _
    $region23: #{tpu_custom_call.1} parent=1 // pred_check_branch
      %112 = sbr.rel (0) target = $region25
    $region24: #{tpu_custom_call.1} parent=1 // pred_region
      %114 = vsyncadd [#allocation3], 0
      %s115 = sshll.u32 [#allocation2], 4
      %s116 = int_to_ptr.vmem [resolvable:$true] %s115
      %s117 = sshll.u32 %s5, 4
      %s118 = int_to_ptr.hbm [resolvable:$true] %s117
      %123 = dma.vmem_to_hbm [thread:$0]  %s116, 256, %s118, [#allocation3], 128, 128, 8
    $region25: #{tpu_custom_call.1} parent=1 // pred_fallthru
      _
    // Predicated region
    $region26: #{tpu_custom_call.1} parent=1 // pred_check
      _
    $region27: #{tpu_custom_call.1} parent=1 // pred_check_branch
      %125 = sbr.rel (0) target = $region29
    $region28: #{tpu_custom_call.1} parent=1 // pred_region
      %127 = dma.done [#allocation3], 256
    $region29: #{tpu_custom_call.1} parent=1 // pred_fallthru
      _
    %128 = vsyncpa [#allocation3], 1

</llo_original>
